<compile_context>
chip_gen: v7x
topology: tpu7x:2x2x1
jax: 0.10.0
libtpu: 0.0.40
codegen_flags: <defaults>
</compile_context>

<pallas_src>
import functools

import jax
import jax.numpy as jnp
from jax.experimental import pallas as pl
from jax.experimental.pallas import tpu as pltpu

# Below this many total bytes, XLA's native concat wins (per-DMA setup cost
# dominates and the opaque custom call blocks fusion / layout elimination).
_SMALL_FALLBACK_BYTES = 2 << 20  # 2 MiB


def _concat_dma_kernel(*args, channel_counts, num_cores):
    """args = (*in_refs, out_ref, dma_sems).

    Each input ref (HBM) is DMA'd into its channel slab of the output ref
    (HBM).  Start every copy owned by this grid step, then wait on them, so
    the DMA engine runs them concurrently.
    """
    n_in = len(channel_counts)
    in_refs = args[:n_in]
    out_ref = args[n_in]
    sems = args[n_in + 1]

    offsets = []
    off = 0
    for c in channel_counts:
        offsets.append(off)
        off += c

    def issue(indices):
        copies = []
        for k in indices:
            cp = pltpu.make_async_copy(
                in_refs[k],
                out_ref.at[:, offsets[k]:offsets[k] + channel_counts[k], :, :],
                sems.at[k],
            )
            cp.start()
            copies.append(cp)
        # Nothing follows these waits; if compute is ever added here, wait only
        # on the slab about to be consumed (narrow data-dep) instead.
        for cp in copies:
            cp.wait()

    if num_cores == 1:
        issue(list(range(n_in)))
    else:
        pid = pl.program_id(0)
        for core in range(num_cores):
            # Static round-robin assignment of inputs to cores.
            idx = [k for k in range(n_in) if (k % num_cores) == core]
            if not idx:
                continue

            @pl.when(pid == core)
            def _(idx=idx):
                issue(idx)


def _concat_channels_pallas(xs, split_across_cores=False):
    n, _, h, w = xs[0].shape
    dtype = xs[0].dtype
    cs = tuple(int(x.shape[1]) for x in xs)
    c_total = sum(cs)
    total_bytes = sum(int(x.size) * x.dtype.itemsize for x in xs)

    num_cores = 2 if (split_across_cores and len(xs) > 1) else 1
    kernel = functools.partial(
        _concat_dma_kernel, channel_counts=cs, num_cores=num_cores
    )

    kwargs = {}
    if num_cores > 1:
        kwargs["grid"] = (num_cores,)
        kwargs["compiler_params"] = pltpu.CompilerParams(
            dimension_semantics=("parallel",)
        )

    return pl.pallas_call(
        kernel,
        out_shape=jax.ShapeDtypeStruct((n, c_total, h, w), dtype),
        # Leave everything in HBM; the kernel moves data with explicit DMAs.
        in_specs=[pl.BlockSpec(memory_space=pl.ANY) for _ in xs],
        out_specs=pl.BlockSpec(memory_space=pl.ANY),
        scratch_shapes=[pltpu.SemaphoreType.DMA((len(xs),))],
        cost_estimate=pl.CostEstimate(
            flops=0, transcendentals=0, bytes_accessed=2 * total_bytes
        ),
        **kwargs,
    )(*xs)


def concat_channels(xs, *, force_pallas=False, split_across_cores=False):
    """Concatenate a list of NCHW arrays along dim=1.

    Dispatches to the Pallas HBM->HBM DMA kernel for large inputs and to
    jnp.concatenate for tiny ones (where per-DMA fixed cost dominates and the
    opaque custom call blocks XLA fusion).
    """
    assert len(xs) >= 1
    n, _, h, w = xs[0].shape
    dtype = xs[0].dtype
    for x in xs:
        assert x.ndim == 4
        assert x.shape[0] == n and x.shape[2] == h and x.shape[3] == w
        assert x.dtype == dtype

    if len(xs) == 1:
        return xs[0]

    total_bytes = sum(int(x.size) * x.dtype.itemsize for x in xs)
    if not force_pallas and total_bytes < _SMALL_FALLBACK_BYTES:
        return jnp.concatenate(xs, axis=1)

    return _concat_channels_pallas(xs, split_across_cores=split_across_cores)


class Concat:
    """JAX/Pallas port of yolov5 Concat.

    dim=1 (channel concat, the only case yolov5 uses) goes through the Pallas
    slab-DMA kernel for large tensors; anything else falls back to
    jnp.concatenate to preserve torch.cat semantics.
    """

    def __init__(self, dimension=1, force_pallas=False, split_across_cores=False):
        self.d = dimension
        self.force_pallas = force_pallas
        self.split_across_cores = split_across_cores

    def __call__(self, x):
        if self.d == 1 and all(xi.ndim == 4 for xi in x):
            return concat_channels(
                x,
                force_pallas=self.force_pallas,
                split_across_cores=self.split_across_cores,
            )
        # TODO(synk): non-channel concat has no dedicated Pallas kernel; use XLA.
        return jnp.concatenate(x, axis=self.d)


if __name__ == "__main__":
    key = jax.random.PRNGKey(0)
    k1, k2, k3 = jax.random.split(key, 3)

    # Small NCHW inputs, differing channel counts (typical of yolov5 Concat).
    x1 = jax.random.normal(k1, (2, 4, 16, 16), dtype=jnp.float32)
    x2 = jax.random.normal(k2, (2, 8, 16, 16), dtype=jnp.float32)
    x3 = jax.random.normal(k3, (2, 4, 16, 16), dtype=jnp.float32)
    xs = [x1, x2, x3]
    ref = jnp.concatenate(xs, axis=1)

    # 1) Default module path (tiny shapes -> auto jnp.concatenate fallback).
    module = Concat(dimension=1)
    out_auto = jax.block_until_ready(module(xs))
    assert out_auto.shape == ref.shape, (out_auto.shape, ref.shape)
    assert jnp.array_equal(out_auto, ref), "auto-dispatch concat mismatch"

    # 2) Force the Pallas HBM->HBM DMA kernel (single-core DMA issue).
    out_pallas = jax.block_until_ready(concat_channels(xs, force_pallas=True))
    assert out_pallas.shape == ref.shape, (out_pallas.shape, ref.shape)
    assert jnp.array_equal(out_pallas, ref), "Pallas concat mismatch"

    # 3) Force the Pallas kernel with the v7x two-TensorCore DMA-issue split
    #    (correct, merely sequential, on single-core chips).
    out_split = jax.block_until_ready(
        concat_channels(xs, force_pallas=True, split_across_cores=True)
    )
    assert out_split.shape == ref.shape, (out_split.shape, ref.shape)
    assert jnp.array_equal(out_split, ref), "Pallas split-core concat mismatch"

    print("KERNEL_OK")
</pallas_src>

<mosaic_0001>
module attributes {stable_mosaic.version = 11 : i64} {
  func.func @_concat_dma_kernel(%arg0: memref<2x4x16x16xf32, #tpu.memory_space<any>>, %arg1: memref<2x8x16x16xf32, #tpu.memory_space<any>>, %arg2: memref<2x4x16x16xf32, #tpu.memory_space<any>>, %arg3: memref<2x16x16x16xf32, #tpu.memory_space<any>>, %arg4: memref<3x!tpu.dma_semaphore, #tpu.memory_space<semaphore_mem>>) attributes {dimension_semantics = [], scalar_prefetch = 0 : i64, scratch_operands = 1 : i64, tpu.core_type = #tpu.core_type<tc>} {
    %c0_i32 = arith.constant 0 : i32
    %c0_i32_0 = arith.constant 0 : i32
    %c0_i32_1 = arith.constant 0 : i32
    %c0_i32_2 = arith.constant 0 : i32
    %c0_i32_3 = arith.constant 0 : i32
    %0 = tpu.memref_slice %arg3[%c0_i32_0, %c0_i32_1, %c0_i32_2, %c0_i32_3] : memref<2x16x16x16xf32, #tpu.memory_space<any>> -> memref<2x4x16x16xf32, #tpu.memory_space<any>>
    %1 = tpu.memref_slice %arg4[%c0_i32] : memref<3x!tpu.dma_semaphore, #tpu.memory_space<semaphore_mem>> -> memref<1x!tpu.dma_semaphore, #tpu.memory_space<semaphore_mem>>
    %2 = tpu.memref_squeeze %1 : memref<1x!tpu.dma_semaphore, #tpu.memory_space<semaphore_mem>> -> memref<!tpu.dma_semaphore, #tpu.memory_space<semaphore_mem>>
    tpu.enqueue_dma source(%arg0 : memref<2x4x16x16xf32, #tpu.memory_space<any>>) target(%0 : memref<2x4x16x16xf32, #tpu.memory_space<any>>) target_semaphore(%2 : memref<!tpu.dma_semaphore, #tpu.memory_space<semaphore_mem>>)
    %c1_i32 = arith.constant 1 : i32
    %c0_i32_4 = arith.constant 0 : i32
    %c4_i32 = arith.constant 4 : i32
    %c0_i32_5 = arith.constant 0 : i32
    %c0_i32_6 = arith.constant 0 : i32
    %3 = tpu.memref_slice %arg3[%c0_i32_4, %c4_i32, %c0_i32_5, %c0_i32_6] : memref<2x16x16x16xf32, #tpu.memory_space<any>> -> memref<2x8x16x16xf32, #tpu.memory_space<any>>
    %4 = tpu.memref_slice %arg4[%c1_i32] : memref<3x!tpu.dma_semaphore, #tpu.memory_space<semaphore_mem>> -> memref<1x!tpu.dma_semaphore, #tpu.memory_space<semaphore_mem>>
    %5 = tpu.memref_squeeze %4 : memref<1x!tpu.dma_semaphore, #tpu.memory_space<semaphore_mem>> -> memref<!tpu.dma_semaphore, #tpu.memory_space<semaphore_mem>>
    tpu.enqueue_dma source(%arg1 : memref<2x8x16x16xf32, #tpu.memory_space<any>>) target(%3 : memref<2x8x16x16xf32, #tpu.memory_space<any>>) target_semaphore(%5 : memref<!tpu.dma_semaphore, #tpu.memory_space<semaphore_mem>>)
    %c2_i32 = arith.constant 2 : i32
    %c0_i32_7 = arith.constant 0 : i32
    %c12_i32 = arith.constant 12 : i32
    %c0_i32_8 = arith.constant 0 : i32
    %c0_i32_9 = arith.constant 0 : i32
    %6 = tpu.memref_slice %arg3[%c0_i32_7, %c12_i32, %c0_i32_8, %c0_i32_9] : memref<2x16x16x16xf32, #tpu.memory_space<any>> -> memref<2x4x16x16xf32, #tpu.memory_space<any>>
    %7 = tpu.memref_slice %arg4[%c2_i32] : memref<3x!tpu.dma_semaphore, #tpu.memory_space<semaphore_mem>> -> memref<1x!tpu.dma_semaphore, #tpu.memory_space<semaphore_mem>>
    %8 = tpu.memref_squeeze %7 : memref<1x!tpu.dma_semaphore, #tpu.memory_space<semaphore_mem>> -> memref<!tpu.dma_semaphore, #tpu.memory_space<semaphore_mem>>
    tpu.enqueue_dma source(%arg2 : memref<2x4x16x16xf32, #tpu.memory_space<any>>) target(%6 : memref<2x4x16x16xf32, #tpu.memory_space<any>>) target_semaphore(%8 : memref<!tpu.dma_semaphore, #tpu.memory_space<semaphore_mem>>)
    %c0_i32_10 = arith.constant 0 : i32
    %c0_i32_11 = arith.constant 0 : i32
    %c0_i32_12 = arith.constant 0 : i32
    %c0_i32_13 = arith.constant 0 : i32
    %c0_i32_14 = arith.constant 0 : i32
    %9 = tpu.memref_slice %arg3[%c0_i32_11, %c0_i32_12, %c0_i32_13, %c0_i32_14] : memref<2x16x16x16xf32, #tpu.memory_space<any>> -> memref<2x4x16x16xf32, #tpu.memory_space<any>>
    %10 = tpu.memref_slice %arg4[%c0_i32_10] : memref<3x!tpu.dma_semaphore, #tpu.memory_space<semaphore_mem>> -> memref<1x!tpu.dma_semaphore, #tpu.memory_space<semaphore_mem>>
    %11 = tpu.memref_squeeze %10 : memref<1x!tpu.dma_semaphore, #tpu.memory_space<semaphore_mem>> -> memref<!tpu.dma_semaphore, #tpu.memory_space<semaphore_mem>>
    tpu.wait_dma2 semaphore(%11 : memref<!tpu.dma_semaphore, #tpu.memory_space<semaphore_mem>>) src(%arg0 : memref<2x4x16x16xf32, #tpu.memory_space<any>>) dst(%9 : memref<2x4x16x16xf32, #tpu.memory_space<any>>)
    %c1_i32_15 = arith.constant 1 : i32
    %c0_i32_16 = arith.constant 0 : i32
    %c4_i32_17 = arith.constant 4 : i32
    %c0_i32_18 = arith.constant 0 : i32
    %c0_i32_19 = arith.constant 0 : i32
    %12 = tpu.memref_slice %arg3[%c0_i32_16, %c4_i32_17, %c0_i32_18, %c0_i32_19] : memref<2x16x16x16xf32, #tpu.memory_space<any>> -> memref<2x8x16x16xf32, #tpu.memory_space<any>>
    %13 = tpu.memref_slice %arg4[%c1_i32_15] : memref<3x!tpu.dma_semaphore, #tpu.memory_space<semaphore_mem>> -> memref<1x!tpu.dma_semaphore, #tpu.memory_space<semaphore_mem>>
    %14 = tpu.memref_squeeze %13 : memref<1x!tpu.dma_semaphore, #tpu.memory_space<semaphore_mem>> -> memref<!tpu.dma_semaphore, #tpu.memory_space<semaphore_mem>>
    tpu.wait_dma2 semaphore(%14 : memref<!tpu.dma_semaphore, #tpu.memory_space<semaphore_mem>>) src(%arg1 : memref<2x8x16x16xf32, #tpu.memory_space<any>>) dst(%12 : memref<2x8x16x16xf32, #tpu.memory_space<any>>)
    %c2_i32_20 = arith.constant 2 : i32
    %c0_i32_21 = arith.constant 0 : i32
    %c12_i32_22 = arith.constant 12 : i32
    %c0_i32_23 = arith.constant 0 : i32
    %c0_i32_24 = arith.constant 0 : i32
    %15 = tpu.memref_slice %arg3[%c0_i32_21, %c12_i32_22, %c0_i32_23, %c0_i32_24] : memref<2x16x16x16xf32, #tpu.memory_space<any>> -> memref<2x4x16x16xf32, #tpu.memory_space<any>>
    %16 = tpu.memref_slice %arg4[%c2_i32_20] : memref<3x!tpu.dma_semaphore, #tpu.memory_space<semaphore_mem>> -> memref<1x!tpu.dma_semaphore, #tpu.memory_space<semaphore_mem>>
    %17 = tpu.memref_squeeze %16 : memref<1x!tpu.dma_semaphore, #tpu.memory_space<semaphore_mem>> -> memref<!tpu.dma_semaphore, #tpu.memory_space<semaphore_mem>>
    tpu.wait_dma2 semaphore(%17 : memref<!tpu.dma_semaphore, #tpu.memory_space<semaphore_mem>>) src(%arg2 : memref<2x4x16x16xf32, #tpu.memory_space<any>>) dst(%15 : memref<2x4x16x16xf32, #tpu.memory_space<any>>)
    return
  }
}

</mosaic_0001>

<llo_original>
// kernel: tpu_custom_call.1
$region0: #{tpu_custom_call.1}
  #allocation0 [shape = 'u32[]', space=smem, size = 0x4, offset = 0x4, fixed_abs, tag = 'smem constant byte address 0x4 - core index']
  #allocation1 [shape = 'u32[144,128]{1,0:T(1,128)}', space=vmem, size = 0x12000, scoped, tag = 'internal scratch']
  #allocation2 [shape = 's32[3]{0}', space=sflag, size = 0xc, scoped, tag = 'scratch operand']
  #allocation3 [shape = 's32[]', space=sflag, size = 0x4, offset = 0, fixed_abs, tag = 'sflag constant byte address 0x0 - dummy sync flag']
  #allocation5 [shape = 's32[]', space=sflag, size = 0x4, offset = 0, fixed_abs, tag = 'sflag constant byte address 0x0 - dummy sync flag']
  #allocation7 [shape = 's32[]', space=sflag, size = 0x4, offset = 0, fixed_abs, tag = 'sflag constant byte address 0x0 - dummy sync flag']
  %s0 = inlined_call_operand.hbm [shape: f32[2,4,16,16], index: 0, kind: input, shape index: {}]
  %s1 = inlined_call_operand.hbm [shape: f32[2,8,16,16], index: 1, kind: input, shape index: {}]
  %s2 = inlined_call_operand.hbm [shape: f32[2,4,16,16], index: 2, kind: input, shape index: {}]
  %s3 = inlined_call_operand.hbm [shape: f32[2,16,16,16], index: 3, kind: output, shape index: {}]
  %s4 = sld [smem:[#allocation0]]
  $region2: #{tpu_custom_call.1} parent=0
    _
  %s6 = ssub.s32 1, %s4
  %s7 = scalar_select 0, %s6, %s4
  $region1: #{tpu_custom_call.1} parent=0
    #allocation4 [shape = 'u32[3]{0}', space=smem, size = 0xc, scoped, tag = 'DMA stride descriptor']
    #allocation6 [shape = 'u32[3]{0}', space=smem, size = 0xc, scoped, tag = 'DMA stride descriptor']
    #allocation8 [shape = 'u32[3]{0}', space=smem, size = 0xc, scoped, tag = 'DMA stride descriptor']
    %s9 = sshll.u32 1, 14
    %s10 = sxor.u32 4294967295, %s9
    %s13 = sshll.u32 3, 24
    %s14 = sxor.u32 4294967295, %s13
    %s15 = sand.u32 0, %s14
    %s17 = sor.u32 %s15, 0
    %20 = sst [smem:[#allocation4]] 1024
    %s21 = scalar_lea.smem [#allocation4], 1
    %22 = sst [smem:[%s21]] 4096
    %s23 = scalar_lea.smem [#allocation4], 2
    %24 = sst [smem:[%s23]] 64
    %26 = dma.general %s0, 2048, %s3, [#allocation2], [#allocation3], [#allocation4], %s17, 0
    %s27 = scalar_lea.hbm %s3, 1024
    %s28 = scalar_lea.sflag [#allocation2], 1
    %s30 = sshll.u32 1, 14
    %s31 = sxor.u32 4294967295, %s30
    %s34 = sshll.u32 3, 24
    %s35 = sxor.u32 4294967295, %s34
    %s36 = sand.u32 0, %s35
    %s38 = sor.u32 %s36, 0
    %41 = sst [smem:[#allocation6]] 2048
    %s42 = scalar_lea.smem [#allocation6], 1
    %43 = sst [smem:[%s42]] 4096
    %s44 = scalar_lea.smem [#allocation6], 2
    %45 = sst [smem:[%s44]] 128
    %47 = dma.general %s1, 4096, %s27, %s28, [#allocation5], [#allocation6], %s38, 0
    %s48 = scalar_lea.hbm %s3, 3072
    %s49 = scalar_lea.sflag [#allocation2], 2
    %s51 = sshll.u32 1, 14
    %s52 = sxor.u32 4294967295, %s51
    %s55 = sshll.u32 3, 24
    %s56 = sxor.u32 4294967295, %s55
    %s57 = sand.u32 0, %s56
    %s59 = sor.u32 %s57, 0
    %62 = sst [smem:[#allocation8]] 1024
    %s63 = scalar_lea.smem [#allocation8], 1
    %64 = sst [smem:[%s63]] 4096
    %s65 = scalar_lea.smem [#allocation8], 2
    %66 = sst [smem:[%s65]] 64
    %68 = dma.general %s2, 2048, %s48, %s49, [#allocation7], [#allocation8], %s59, 0
    %s69 = smul.u32 2, 4
    %s70 = smul.u32 %s69, 16
    %s71 = smul.u32 %s70, 1
    %s72 = sshll.u32 %s71, 4
    %73 = dma.done [#allocation2], %s72
    %s74 = smul.u32 2, 8
    %s75 = smul.u32 %s74, 16
    %s76 = smul.u32 %s75, 1
    %s77 = sshll.u32 %s76, 4
    %78 = dma.done %s28, %s77
    %s79 = sshll.u32 %s71, 4
    %80 = dma.done %s49, %s79
  %81 = vsyncmov [#allocation2]
  %s82 = vpop.sfrf %81
  %p83 = scmp.eq.s32.totalorder %s82, 0
  %p84 = pneg %p83
  %86 = shalt.err (%p84)
  %s87 = scalar_lea.sflag [#allocation2], 1
  %88 = vsyncmov %s87
  %s89 = vpop.sfrf %88
  %p90 = scmp.eq.s32.totalorder %s89, 0
  %p91 = pneg %p90
  %93 = shalt.err (%p91)
  %s94 = scalar_lea.sflag [#allocation2], 2
  %95 = vsyncmov %s94
  %s96 = vpop.sfrf %95
  %p97 = scmp.eq.s32.totalorder %s96, 0
  %p98 = pneg %p97
  %100 = shalt.err (%p98)

</llo_original>
